<compile_context>
chip_gen: v7x
topology: tpu7x:2x2x1
jax: 0.10.0
libtpu: 0.0.40
codegen_flags: <defaults>
</compile_context>

<pallas_src>
import jax
import jax.numpy as jnp
from jax.experimental import pallas as pl
from jax.experimental.pallas import tpu as pltpu

LANES = 128
MAX_TILE_ROWS = 8192                       # (8192,128) f32 = 4 MiB per input block
_KERNEL_DTYPES = (jnp.float32, jnp.bfloat16)


def _round_up(x, m):
    return ((x + m - 1) // m) * m


def _num_tensorcores():
    # The leading "parallel" grid axis only pays off on multi-TensorCore chips
    # (v4 megacore / v7x); on v5e/v6e it is just a serialized loop.
    try:
        kind = jax.devices()[0].device_kind.lower()
    except Exception:
        return 1
    return 2 if ("v7" in kind or "v4" in kind) else 1


def _make_bce_kernel(w0, valid_rows, tile_rows, tiles_per_core):
    w0 = float(w0)

    def kernel(p_ref, y_ref, out_ref):
        c = pl.program_id(0)
        t = pl.program_id(1)

        @pl.when(t == 0)
        def _init():
            out_ref[...] = jnp.zeros_like(out_ref)

        p = p_ref[...].astype(jnp.float32)
        y = y_ref[...].astype(jnp.float32)

        # binary labels: q = p if y==1 else 1-p ; weight = w0 if y==1 else 1-w0
        m = y != 0.0
        q = jnp.where(m, p, 1.0 - p)
        neg_w = jnp.where(m, -w0, w0 - 1.0)                  # = -weight
        per_elem = neg_w * jnp.maximum(jnp.log(q), -100.0)   # torch clamps log at -100

        def accumulate(vals):
            # per-lane partial sums; lane reduction + 1/N scale happen in wrapper
            out_ref[...] += jnp.sum(vals, axis=0, keepdims=True)[None]

        block_row0 = (c * tiles_per_core + t) * tile_rows
        is_full = block_row0 + tile_rows <= valid_rows

        @pl.when(is_full)
        def _full():
            accumulate(per_elem)

        @pl.when(jnp.logical_not(is_full))
        def _partial():
            # mask rows past the valid region (partial edge block or a fully
            # duplicated/clamped block); garbage/NaNs are replaced before the sum
            row_ids = jax.lax.broadcasted_iota(jnp.int32, per_elem.shape, 0)
            valid = (row_ids + block_row0) < valid_rows
            accumulate(jnp.where(valid, per_elem, 0.0))

    return kernel


def bce_loss(y_pred, y_true, w0, *, max_tile_rows=MAX_TILE_ROWS, num_cores=None):
    """y_pred, y_true: arrays (flattened internally); w0: positive-class weight."""
    if num_cores is None:
        num_cores = _num_tensorcores()
    w0 = float(w0)

    p = y_pred.reshape(-1)
    y = y_true.reshape(-1)
    if p.dtype not in _KERNEL_DTYPES:
        p = p.astype(jnp.float32)
    if y.dtype not in _KERNEL_DTYPES:
        y = y.astype(jnp.float32)

    n = int(p.shape[0])
    rows = n // LANES
    tail = n - rows * LANES

    def elem_loss(pp, yy):
        pp = pp.astype(jnp.float32)
        yy = yy.astype(jnp.float32)
        m = yy != 0.0
        q = jnp.where(m, pp, 1.0 - pp)
        neg_w = jnp.where(m, -w0, w0 - 1.0)
        return neg_w * jnp.maximum(jnp.log(q), -100.0)

    total = jnp.float32(0.0)

    # <128-element remainder handled with plain jnp (tiny) so the kernel inputs
    # stay reshape-only (no full-array jnp.pad copy).
    if tail:
        total = total + jnp.sum(elem_loss(p[rows * LANES:], y[rows * LANES:]))

    if rows > 0:
        # When tail == 0 this reshape is metadata-only (no HBM copy).
        p2 = (p[: rows * LANES] if tail else p).reshape(rows, LANES)
        y2 = (y[: rows * LANES] if tail else y).reshape(rows, LANES)

        tile_rows = min(max_tile_rows, _round_up(pl.cdiv(rows, num_cores), 32))
        if tile_rows >= rows:
            # single block covering the full array (full-dim exemption from the
            # 8-row rule); a >1-core split would only duplicate work here
            tile_rows = rows
            num_cores = 1
        n_blocks = pl.cdiv(rows, tile_rows)
        tiles_per_core = pl.cdiv(n_blocks, num_cores)

        def in_map(c, t, _tpc=tiles_per_core, _last=n_blocks - 1):
            # clamp so no block is ever fully out of bounds; clamped duplicates
            # are fully masked inside the kernel
            return (jnp.minimum(c * _tpc + t, _last), 0)

        bytes_accessed = int(p2.size * p2.dtype.itemsize + y2.size * y2.dtype.itemsize)

        partials = pl.pallas_call(
            _make_bce_kernel(w0, rows, tile_rows, tiles_per_core),
            out_shape=jax.ShapeDtypeStruct((num_cores, 1, LANES), jnp.float32),
            grid_spec=pltpu.PrefetchScalarGridSpec(
                num_scalar_prefetch=0,
                grid=(num_cores, tiles_per_core),
                in_specs=[
                    pl.BlockSpec((tile_rows, LANES), in_map),
                    pl.BlockSpec((tile_rows, LANES), in_map),
                ],
                out_specs=pl.BlockSpec((1, 1, LANES), lambda c, t: (c, 0, 0)),
            ),
            compiler_params=pltpu.CompilerParams(
                dimension_semantics=("parallel", "arbitrary"),
                vmem_limit_bytes=32 * 1024 * 1024),
            cost_estimate=pl.CostEstimate(
                flops=6 * rows * LANES,
                transcendentals=rows * LANES,
                bytes_accessed=bytes_accessed),
        )(p2, y2)

        total = total + jnp.sum(partials)

    # mean over the true N
    return total * (1.0 / n)


def _reference(y_pred, y_true, w0):
    # plain-JAX reference (matches torch F.binary_cross_entropy with weight)
    w = jnp.where(y_true == 1.0, w0, 1.0 - w0)
    return jnp.mean(
        -w * (y_true * jnp.maximum(jnp.log(y_pred), -100.0)
              + (1.0 - y_true) * jnp.maximum(jnp.log(1.0 - y_pred), -100.0)))


if __name__ == "__main__":
    key = jax.random.PRNGKey(0)
    W0 = 0.7   # deterministic "weights[0]" from the module init kwargs

    # case 1: N not a multiple of 128 -> wrapper tail path + single-block kernel
    # case 2: N multiple of 128 -> copy-free reshape path
    # case 3: small tiles forced -> multi-block accumulation, masked partial
    #         block and clamped (fully-masked) duplicate block, 2-wide grid
    cases = [
        dict(n=1000, kwargs={}),
        dict(n=2048, kwargs={}),
        dict(n=10240, kwargs=dict(max_tile_rows=32, num_cores=2)),
    ]

    for case in cases:
        key, k1, k2 = jax.random.split(key, 3)
        n = case["n"]
        y_pred = jax.nn.sigmoid(jax.random.normal(k1, (n,), dtype=jnp.float32))
        y_true = (jax.random.uniform(k2, (n,)) > 0.5).astype(jnp.float32)

        loss = bce_loss(y_pred, y_true, W0, **case["kwargs"])
        loss = jax.block_until_ready(loss)

        ref = _reference(y_pred, y_true, W0)
        assert jnp.allclose(loss, ref, rtol=1e-4, atol=1e-6), (n, loss, ref)

    print("KERNEL_OK")
</pallas_src>

<mosaic_0001>
module attributes {stable_mosaic.version = 11 : i64} {
  func.func @kernel(%arg0: i32, %arg1: i32, %arg2: memref<7x128xf32, #tpu.memory_space<vmem>>, %arg3: memref<7x128xf32, #tpu.memory_space<vmem>>, %arg4: memref<1x1x128xf32, #tpu.memory_space<vmem>>) attributes {dimension_semantics = [#tpu.dimension_semantics<parallel>, #tpu.dimension_semantics<arbitrary>], iteration_bounds = array<i64: 1, 1>, scalar_prefetch = 0 : i64, scratch_operands = 0 : i64, tpu.core_type = #tpu.core_type<tc>, window_params = [{transform_indices = @transform_0, window_bounds = array<i64: 7, 128>}, {transform_indices = @transform_1, window_bounds = array<i64: 7, 128>}, {transform_indices = @transform_2, window_bounds = array<i64: 1, 1, 128>}]} {
    %c0_i32 = arith.constant 0 : i32
    %0 = arith.cmpi eq, %arg1, %c0_i32 : i32
    %1 = arith.extui %0 : i1 to i32
    %c0_i32_0 = arith.constant 0 : i32
    %2 = arith.cmpi ne, %1, %c0_i32_0 : i32
    scf.if %2 {
      %cst_12 = arith.constant 0.000000e+00 : f32
      %27 = vector.broadcast %cst_12 : f32 to vector<1x1x128xf32>
      %c0_13 = arith.constant 0 : index
      %c0_14 = arith.constant 0 : index
      %c0_15 = arith.constant 0 : index
      %28 = vector.load %arg4[%c0_13, %c0_14, %c0_15] : memref<1x1x128xf32, #tpu.memory_space<vmem>>, vector<1x1x128xf32>
      tpu.vector_store %arg4[%c0_13, %c0_14, %c0_15], %27 {strides = array<i32>} : memref<1x1x128xf32, #tpu.memory_space<vmem>>, vector<1x1x128xf32>,
    } else {
    }
    %c0 = arith.constant 0 : index
    %c0_1 = arith.constant 0 : index
    %3 = vector.load %arg2[%c0, %c0_1] : memref<7x128xf32, #tpu.memory_space<vmem>>, vector<7x128xf32>
    %c0_2 = arith.constant 0 : index
    %c0_3 = arith.constant 0 : index
    %4 = vector.load %arg3[%c0_2, %c0_3] : memref<7x128xf32, #tpu.memory_space<vmem>>, vector<7x128xf32>
    %cst = arith.constant 0.000000e+00 : f32
    %5 = vector.broadcast %cst : f32 to vector<7x128xf32>
    %6 = arith.cmpf one, %4, %5 : vector<7x128xf32>
    %cst_4 = arith.constant 1.000000e+00 : f32
    %7 = vector.broadcast %cst_4 : f32 to vector<7x128xf32>
    %8 = arith.subf %7, %3 : vector<7x128xf32>
    %9 = arith.select %6, %3, %8 : vector<7x128xi1>, vector<7x128xf32>
    %cst_5 = arith.constant -0.699999988 : f32
    %cst_6 = arith.constant -3.000000e-01 : f32
    %10 = vector.broadcast %cst_5 : f32 to vector<7x128xf32>
    %11 = vector.broadcast %cst_6 : f32 to vector<7x128xf32>
    %12 = arith.select %6, %10, %11 : vector<7x128xi1>, vector<7x128xf32>
    %13 = math.log %9 : vector<7x128xf32>
    %cst_7 = arith.constant -1.000000e+02 : f32
    %14 = vector.broadcast %cst_7 : f32 to vector<7x128xf32>
    %15 = arith.maximumf %13, %14 : vector<7x128xf32>
    %16 = arith.mulf %12, %15 : vector<7x128xf32>
    %c1_i32 = arith.constant 1 : i32
    %17 = arith.muli %arg0, %c1_i32 : i32
    %18 = arith.addi %17, %arg1 : i32
    %c7_i32 = arith.constant 7 : i32
    %19 = arith.muli %18, %c7_i32 : i32
    %c7_i32_8 = arith.constant 7 : i32
    %20 = arith.addi %19, %c7_i32_8 : i32
    %c7_i32_9 = arith.constant 7 : i32
    %21 = arith.cmpi sle, %20, %c7_i32_9 : i32
    %22 = arith.extui %21 : i1 to i32
    %c0_i32_10 = arith.constant 0 : i32
    %23 = arith.cmpi ne, %22, %c0_i32_10 : i32
    scf.if %23 {
      %c0_12 = arith.constant 0 : index
      %c0_13 = arith.constant 0 : index
      %c0_14 = arith.constant 0 : index
      %27 = vector.load %arg4[%c0_12, %c0_13, %c0_14] : memref<1x1x128xf32, #tpu.memory_space<vmem>>, vector<1x1x128xf32>
      %cst_15 = arith.constant dense<0.000000e+00> : vector<128xf32>
      %28 = vector.multi_reduction <add>, %16, %cst_15 [0] : vector<7x128xf32> to vector<128xf32>
      %29 = vector.shape_cast %28 : vector<128xf32> to vector<1x128xf32>
      %30 = vector.shape_cast %29 : vector<1x128xf32> to vector<1x1x128xf32>
      %31 = arith.addf %27, %30 : vector<1x1x128xf32>
      %c0_16 = arith.constant 0 : index
      %c0_17 = arith.constant 0 : index
      %c0_18 = arith.constant 0 : index
      %32 = vector.load %arg4[%c0_16, %c0_17, %c0_18] : memref<1x1x128xf32, #tpu.memory_space<vmem>>, vector<1x1x128xf32>
      tpu.vector_store %arg4[%c0_16, %c0_17, %c0_18], %31 {strides = array<i32>} : memref<1x1x128xf32, #tpu.memory_space<vmem>>, vector<1x1x128xf32>,
    } else {
    }
    %true = arith.constant true
    %24 = arith.xori %21, %true : i1
    %25 = arith.extui %24 : i1 to i32
    %c0_i32_11 = arith.constant 0 : i32
    %26 = arith.cmpi ne, %25, %c0_i32_11 : i32
    scf.if %26 {
      %27 = tpu.iota {dimensions = array<i32: 0>} : vector<7x128xi32>
      %28 = vector.broadcast %19 : i32 to vector<7x128xi32>
      %29 = arith.addi %27, %28 : vector<7x128xi32>
      %c7_i32_12 = arith.constant 7 : i32
      %30 = vector.broadcast %c7_i32_12 : i32 to vector<7x128xi32>
      %31 = arith.cmpi slt, %29, %30 : vector<7x128xi32>
      %cst_13 = arith.constant 0.000000e+00 : f32
      %32 = vector.broadcast %cst_13 : f32 to vector<7x128xf32>
      %33 = arith.select %31, %16, %32 : vector<7x128xi1>, vector<7x128xf32>
      %c0_14 = arith.constant 0 : index
      %c0_15 = arith.constant 0 : index
      %c0_16 = arith.constant 0 : index
      %34 = vector.load %arg4[%c0_14, %c0_15, %c0_16] : memref<1x1x128xf32, #tpu.memory_space<vmem>>, vector<1x1x128xf32>
      %cst_17 = arith.constant dense<0.000000e+00> : vector<128xf32>
      %35 = vector.multi_reduction <add>, %33, %cst_17 [0] : vector<7x128xf32> to vector<128xf32>
      %36 = vector.shape_cast %35 : vector<128xf32> to vector<1x128xf32>
      %37 = vector.shape_cast %36 : vector<1x128xf32> to vector<1x1x128xf32>
      %38 = arith.addf %34, %37 : vector<1x1x128xf32>
      %c0_18 = arith.constant 0 : index
      %c0_19 = arith.constant 0 : index
      %c0_20 = arith.constant 0 : index
      %39 = vector.load %arg4[%c0_18, %c0_19, %c0_20] : memref<1x1x128xf32, #tpu.memory_space<vmem>>, vector<1x1x128xf32>
      tpu.vector_store %arg4[%c0_18, %c0_19, %c0_20], %38 {strides = array<i32>} : memref<1x1x128xf32, #tpu.memory_space<vmem>>, vector<1x1x128xf32>,
    } else {
    }
    return
  }
  func.func @transform_0(%arg0: i32, %arg1: i32) -> (i32, i32) {
    %c1_i32 = arith.constant 1 : i32
    %0 = arith.muli %arg0, %c1_i32 : i32
    %1 = arith.addi %0, %arg1 : i32
    %c0_i32 = arith.constant 0 : i32
    %2 = arith.minsi %1, %c0_i32 : i32
    %c0_i32_0 = arith.constant 0 : i32
    %c0_i32_1 = arith.constant 0 : i32
    return %2, %c0_i32_0 : i32, i32
  }
  func.func @transform_1(%arg0: i32, %arg1: i32) -> (i32, i32) {
    %c1_i32 = arith.constant 1 : i32
    %0 = arith.muli %arg0, %c1_i32 : i32
    %1 = arith.addi %0, %arg1 : i32
    %c0_i32 = arith.constant 0 : i32
    %2 = arith.minsi %1, %c0_i32 : i32
    %c0_i32_0 = arith.constant 0 : i32
    %c0_i32_1 = arith.constant 0 : i32
    return %2, %c0_i32_0 : i32, i32
  }
  func.func @transform_2(%arg0: i32, %arg1: i32) -> (i32, i32, i32) {
    %c0_i32 = arith.constant 0 : i32
    %c0_i32_0 = arith.constant 0 : i32
    %c0_i32_1 = arith.constant 0 : i32
    return %arg0, %c0_i32, %c0_i32_0 : i32, i32, i32
  }
}

</mosaic_0001>

<llo_original>
// kernel: tpu_custom_call.1
$region0: #{tpu_custom_call.1}
  #allocation0 [shape = 'u32[]', space=smem, size = 0x4, offset = 0x4, fixed_abs, tag = 'smem constant byte address 0x4 - core index']
  #allocation1 [shape = 'u32[144,128]{1,0:T(1,128)}', space=vmem, size = 0x12000, scoped, tag = 'internal scratch']
  %s0 = inlined_call_operand.hbm [shape: f32[7,128], index: 0, kind: input, shape index: {}]
  %s1 = inlined_call_operand.hbm [shape: f32[7,128], index: 1, kind: input, shape index: {}]
  %s2 = inlined_call_operand.hbm [shape: f32[1,1,128], index: 2, kind: output, shape index: {}]
  %s3 = sld [smem:[#allocation0]]
  $region38: #{tpu_custom_call.1} parent=0
    _
  %s5 = ssub.s32 1, %s3
  %s6 = scalar_select 0, %s5, %s3
  $region1: #{tpu_custom_call.1} parent=0
    #allocation2 [shape = 'u8[4096]{0}', space=vmem, size = 0x1000, scoped, tag = 'input window, operand 0, single buffered']
    #allocation3 [shape = 's32[1]{0}', space=sflag, size = 0x4, scoped, tag = 'scoped memory for tpu_custom_call.1']
    #allocation4 [shape = 's32[1]{0}', space=sflag, size = 0x4, scoped, tag = 'scoped memory for tpu_custom_call.1']
    #allocation5 [shape = 'u8[4096]{0}', space=vmem, size = 0x1000, scoped, tag = 'input window, operand 1, single buffered']
    #allocation6 [shape = 's32[1]{0}', space=sflag, size = 0x4, scoped, tag = 'scoped memory for tpu_custom_call.1']
    #allocation7 [shape = 'u8[512]{0}', space=vmem, size = 0x400, scoped, tag = 'output window, operand 0, single buffered']
    %7 = vsyncpa [#allocation3], 0
    %8 = vsyncpa [#allocation6], 0
    %9 = vsyncpa [#allocation4], 0
    // Predicated region
    $region2: #{tpu_custom_call.1} parent=1 // pred_check
      _
    $region3: #{tpu_custom_call.1} parent=1 // pred_check_branch
      %11 = sbr.rel (0) target = $region5
    $region4: #{tpu_custom_call.1} parent=1 // pred_region
      %s12 = sadd.s32 0, 0
      %p13 = scmp.lt.s32.totalorder %s12, 0
      %s14 = scalar_select %p13, %s12, 0
      %s16 = ssub.s32 128, 128
      %17 = vsyncadd [#allocation3], %s16
      %s18 = smul.addr %s14, 128
      %s19 = scalar_lea.hbm %s0, %s18
      %s21 = sshll.u32 [#allocation2], 4
      %s22 = int_to_ptr.vmem [resolvable:$true] %s21
      %24 = dma.hbm_to_vmem [thread:$0]  %s19, 128, %s22, [#allocation3]
    $region5: #{tpu_custom_call.1} parent=1 // pred_fallthru
      _
    // Predicated region
    $region6: #{tpu_custom_call.1} parent=1 // pred_check
      _
    $region7: #{tpu_custom_call.1} parent=1 // pred_check_branch
      %26 = sbr.rel (0) target = $region9
    $region8: #{tpu_custom_call.1} parent=1 // pred_region
      %s27 = sadd.s32 0, 0
      %p28 = scmp.lt.s32.totalorder %s27, 0
      %s29 = scalar_select %p28, %s27, 0
      %s31 = ssub.s32 128, 128
      %32 = vsyncadd [#allocation6], %s31
      %s33 = smul.addr %s29, 128
      %s34 = scalar_lea.hbm %s1, %s33
      %s36 = sshll.u32 [#allocation5], 4
      %s37 = int_to_ptr.vmem [resolvable:$true] %s36
      %39 = dma.hbm_to_vmem [thread:$0]  %s34, 128, %s37, [#allocation6]
    $region9: #{tpu_custom_call.1} parent=1 // pred_fallthru
      _
    // Predicated region
    $region10: #{tpu_custom_call.1} parent=1 // pred_check
      _
    $region11: #{tpu_custom_call.1} parent=1 // pred_check_branch
      %41 = sbr.rel (0) target = $region13
    $region12: #{tpu_custom_call.1} parent=1 // pred_region
      %42 = dma.done [#allocation3], 128
    $region13: #{tpu_custom_call.1} parent=1 // pred_fallthru
      _
    // Predicated region
    $region14: #{tpu_custom_call.1} parent=1 // pred_check
      _
    $region15: #{tpu_custom_call.1} parent=1 // pred_check_branch
      %44 = sbr.rel (0) target = $region17
    $region16: #{tpu_custom_call.1} parent=1 // pred_region
      %45 = dma.done [#allocation6], 128
    $region17: #{tpu_custom_call.1} parent=1 // pred_fallthru
      _
    %s46 = sadd.s32 0, 0
    %p47 = scmp.lt.s32.totalorder %s46, 0
    %s48 = scalar_select %p47, %s46, 0
    %s49 = sadd.s32 0, 0
    %p50 = scmp.lt.s32.totalorder %s49, 0
    %s51 = scalar_select %p50, %s49, 0
    %p52 = scmp.eq.s32.totalorder 0, 0
    // Predicated region
    $region18: #{tpu_custom_call.1} parent=1 // pred_check
      %p53 = pneg %p52
    $region19: #{tpu_custom_call.1} parent=1 // pred_check_branch
      %55 = sbr.rel (%p53) target = $region21
    $region20: #{tpu_custom_call.1} parent=1 // pred_region
      %56 = vst [vmem:[#allocation7] sm:$0x1] 0.0
    $region21: #{tpu_custom_call.1} parent=1 // pred_fallthru
      _
    %v57 = vld [vmem:[#allocation2] sm:$0x7f]
    %v58 = vld [vmem:[#allocation5] sm:$0x7f]
    %vm59 = vcmp.ne.f32.partialorder %v58, 0.0
    %v60 = vsub.f32 1.0, %v57
    %v61 = vsel %vm59, %v57, %v60
    %v62 = vsel %vm59, -0.7, -0.3
    %v63 = vlog2.pop %v61
    %v64 = vmul.f32 %v63, 0.6931472
    %v65 = vmax.f32 %v64, -100.0
    %v66 = vmul.f32 %v62, %v65
    %s67 = sadd.s32 0, 0
    %s68 = smul.u32 %s67, 7
    %s69 = sadd.s32 %s68, 7
    %p70 = scmp.le.s32.totalorder %s69, 7
    // Predicated region
    $region22: #{tpu_custom_call.1} parent=1 // pred_check
      %p71 = pneg %p70
    $region23: #{tpu_custom_call.1} parent=1 // pred_check_branch
      %73 = sbr.rel (%p71) target = $region25
    $region24: #{tpu_custom_call.1} parent=1 // pred_region
      %v74 = vld [vmem:[#allocation7] sm:$0x1]
      %vm75 = vcmask 1046528
      %v76 = vsel %vm75, %v66, 0.0
      %v77 = vrot.slane %v76, 4
      %v78 = vadd.f32 %v76, %v77
      %v79 = vrot.slane %v78, 2
      %v80 = vadd.f32 %v78, %v79
      %v81 = vrot.slane %v80, 1
      %v82 = vadd.f32 %v80, %v81
      %v83 = vadd.f32 %v74, %v82
      %84 = vst [vmem:[#allocation7] sm:$0x1] %v83
    $region25: #{tpu_custom_call.1} parent=1 // pred_fallthru
      _
    %p85 = scmp.gt.s32.totalorder %s69, 7
    // Predicated region
    $region26: #{tpu_custom_call.1} parent=1 // pred_check
      %p86 = pneg %p85
    $region27: #{tpu_custom_call.1} parent=1 // pred_check_branch
      %88 = sbr.rel (%p86) target = $region29
    $region28: #{tpu_custom_call.1} parent=1 // pred_region
      %v89 = vlaneseq
      %v90 = vshrl.u32 %v89, 7
      %v91 = vstv %s68
      %v92 = vadd.s32 %v90, %v91
      %vm93 = vcmp.lt.s32.totalorder %v92, 7
      %v94 = vsel %vm93, %v66, 0.0
      %v95 = vld [vmem:[#allocation7] sm:$0x1]
      %vm96 = vcmask 1046528
      %v97 = vsel %vm96, %v94, 0.0
      %v98 = vrot.slane %v97, 4
      %v99 = vadd.f32 %v97, %v98
      %v100 = vrot.slane %v99, 2
      %v101 = vadd.f32 %v99, %v100
      %v102 = vrot.slane %v101, 1
      %v103 = vadd.f32 %v101, %v102
      %v104 = vadd.f32 %v95, %v103
      %105 = vst [vmem:[#allocation7] sm:$0x1] %v104
    $region29: #{tpu_custom_call.1} parent=1 // pred_fallthru
      _
    // Predicated region
    $region30: #{tpu_custom_call.1} parent=1 // pred_check
      _
    $region31: #{tpu_custom_call.1} parent=1 // pred_check_branch
      %107 = sbr.rel (0) target = $region33
    $region32: #{tpu_custom_call.1} parent=1 // pred_region
      %s109 = ssub.s32 16, 16
      %110 = vsyncadd [#allocation4], %s109
      %s112 = sshll.u32 [#allocation7], 4
      %s113 = int_to_ptr.vmem [resolvable:$true] %s112
      %115 = dma.vmem_to_hbm [thread:$0]  %s113, 16, %s2, [#allocation4]
    $region33: #{tpu_custom_call.1} parent=1 // pred_fallthru
      _
    // Predicated region
    $region34: #{tpu_custom_call.1} parent=1 // pred_check
      _
    $region35: #{tpu_custom_call.1} parent=1 // pred_check_branch
      %117 = sbr.rel (0) target = $region37
    $region36: #{tpu_custom_call.1} parent=1 // pred_region
      %118 = dma.done [#allocation4], 16
    $region37: #{tpu_custom_call.1} parent=1 // pred_fallthru
      _
    %119 = vsyncpa [#allocation3], 1
    %120 = vsyncpa [#allocation6], 1
    %121 = vsyncpa [#allocation4], 1

</llo_original>
